<compile_context>
chip_gen: v5e
topology: v5e:2x2
jax: 0.10.0
libtpu: 0.0.40
codegen_flags: <defaults>
</compile_context>

<pallas_src>
import functools

import jax
import jax.numpy as jnp
from jax.experimental import pallas as pl
from jax.experimental.pallas import tpu as pltpu


# ---------------------------------------------------------------------------
# helpers
# ---------------------------------------------------------------------------
def _round_up(x, m):
    return ((x + m - 1) // m) * m


_ACTIVATIONS = {
    "tanh": jnp.tanh,
    "relu": lambda v: jnp.maximum(v, 0.0),
    "sigmoid": jax.nn.sigmoid,
    "gelu": jax.nn.gelu,
    "silu": jax.nn.silu,
    "elu": jax.nn.elu,
    "softplus": jax.nn.softplus,
}
_TRANSCENDENTAL_ACTS = {"tanh", "sigmoid", "gelu", "silu", "elu", "softplus"}


def _get_activation(name):
    if callable(name):
        return name
    if name in _ACTIVATIONS:
        return _ACTIVATIONS[name]
    fn = getattr(jax.nn, name, None)
    if fn is None:
        raise ValueError(f"unsupported activation: {name}")
    return fn


# ---------------------------------------------------------------------------
# Fused MLP kernel: one batch tile per grid step, all layers in one body.
# ---------------------------------------------------------------------------
def _fused_mlp_kernel(x_ref, *rest, num_layers, activation, use_bf16):
    # rest = (w0, b0, w1, b1, ..., w_{L-1}, b_{L-1}, out)
    o_ref = rest[-1]
    wb_refs = rest[:-1]
    act_fn = _get_activation(activation)

    x = x_ref[...]  # (tm, D0_pad) f32
    for l in range(num_layers):
        w = wb_refs[2 * l][...]          # (Dl_pad, Dl1_pad)
        b = wb_refs[2 * l + 1][...]      # (1, Dl1_pad)
        if use_bf16:
            xm = x.astype(jnp.bfloat16)
            wm = w.astype(jnp.bfloat16)
        else:
            xm = x
            wm = w
        # MXU matmul with f32 accumulation; bias + activation in f32.
        y = jnp.dot(xm, wm, preferred_element_type=jnp.float32) + b
        if l < num_layers - 1:
            y = act_fn(y)
        x = y
    o_ref[...] = x.astype(o_ref.dtype)


def fnn_forward(params, x, activation="tanh", *, use_bf16=True, tm_max=512):
    """Fused FNN forward pass on TPU via a single Pallas kernel.

    params: list of (w, b) with w: (in, out) f32, b: (out,) f32
    x:      (B, in0) f32
    """
    B, IN = x.shape
    n_layers = len(params)
    widths = [IN] + [w.shape[1] for (w, _) in params]
    pads = [_round_up(d, 128) for d in widths]          # lane-dense feature dims

    tm = min(_round_up(max(B, 1), 8), tm_max)           # batch tile (sublane mult.)
    B_pad = _round_up(B, tm)

    # --- zero-pad inputs / parameters (zero weight rows for padded inputs
    #     guarantee padded activation columns never contaminate real outputs).
    x_pad = jnp.zeros((B_pad, pads[0]), x.dtype).at[:B, :IN].set(x)
    padded_wb = []
    for l, (w, b) in enumerate(params):
        wp = jnp.zeros((pads[l], pads[l + 1]), w.dtype).at[: w.shape[0], : w.shape[1]].set(w)
        bp = jnp.zeros((1, pads[l + 1]), b.dtype).at[0, : b.shape[0]].set(b)
        padded_wb += [wp, bp]

    OUT_pad = pads[-1]

    # --- BlockSpecs: x/out tiled over batch; weights/biases constant (VMEM-resident).
    in_specs = [pl.BlockSpec((tm, pads[0]), lambda i: (i, 0))]
    for l in range(n_layers):
        in_specs.append(pl.BlockSpec((pads[l], pads[l + 1]), lambda i: (0, 0)))
        in_specs.append(pl.BlockSpec((1, pads[l + 1]), lambda i: (0, 0)))
    out_spec = pl.BlockSpec((tm, OUT_pad), lambda i: (i, 0))

    # --- cost estimate (helps XLA schedule around the custom call).
    flops = 2 * B_pad * sum(pads[l] * pads[l + 1] for l in range(n_layers))
    transcendentals = (
        B_pad * sum(pads[1:-1]) if (activation in _TRANSCENDENTAL_ACTS and n_layers > 1) else 0
    )
    bytes_accessed = 4 * (
        B_pad * pads[0]
        + sum(pads[l] * pads[l + 1] + pads[l + 1] for l in range(n_layers))
        + B_pad * OUT_pad
    )

    # --- VMEM budget: double-buffered tiles + resident weights + headroom,
    #     capped at 64 MiB so it also fits v7x's smaller VMEM.
    weight_bytes = 4 * sum(pads[l] * pads[l + 1] + pads[l + 1] for l in range(n_layers))
    act_bytes = 4 * tm * (pads[0] + OUT_pad)
    inter_bytes = 4 * tm * max(pads)
    vmem_limit = int(min(max(2 * (weight_bytes + act_bytes) + 2 * inter_bytes + (4 << 20),
                             16 << 20), 64 << 20))

    kernel = functools.partial(
        _fused_mlp_kernel,
        num_layers=n_layers,
        activation=activation,
        use_bf16=use_bf16,
    )

    out_pad = pl.pallas_call(
        kernel,
        out_shape=jax.ShapeDtypeStruct((B_pad, OUT_pad), x.dtype),
        grid=(B_pad // tm,),
        in_specs=in_specs,
        out_specs=out_spec,
        compiler_params=pltpu.CompilerParams(
            dimension_semantics=("parallel",),     # v7x: shard batch tiles across TCs
            vmem_limit_bytes=vmem_limit,
        ),
        cost_estimate=pl.CostEstimate(
            flops=flops,
            transcendentals=transcendentals,
            bytes_accessed=bytes_accessed,
        ),
    )(x_pad, *padded_wb)

    return out_pad[:B, : widths[-1]]


# ---------------------------------------------------------------------------
# Parameter init matching FNN.__init__ semantics (weights stored as (in, out)).
# ---------------------------------------------------------------------------
def init_fnn_params(key, layer_sizes, kernel_initializer="Glorot normal"):
    params = []
    for i in range(1, len(layer_sizes)):
        fan_in, fan_out = layer_sizes[i - 1], layer_sizes[i]
        key, sub = jax.random.split(key)
        if kernel_initializer == "Glorot normal":
            std = (2.0 / (fan_in + fan_out)) ** 0.5
            w = std * jax.random.normal(sub, (fan_in, fan_out), dtype=jnp.float32)
        elif kernel_initializer == "Glorot uniform":
            lim = (6.0 / (fan_in + fan_out)) ** 0.5
            w = jax.random.uniform(sub, (fan_in, fan_out), minval=-lim, maxval=lim,
                                   dtype=jnp.float32)
        elif kernel_initializer == "He normal":
            std = (2.0 / fan_in) ** 0.5
            w = std * jax.random.normal(sub, (fan_in, fan_out), dtype=jnp.float32)
        elif kernel_initializer == "He uniform":
            lim = (6.0 / fan_in) ** 0.5
            w = jax.random.uniform(sub, (fan_in, fan_out), minval=-lim, maxval=lim,
                                   dtype=jnp.float32)
        elif kernel_initializer == "zeros":
            w = jnp.zeros((fan_in, fan_out), dtype=jnp.float32)
        else:
            raise ValueError(f"unsupported initializer: {kernel_initializer}")
        b = jnp.zeros((fan_out,), dtype=jnp.float32)
        params.append((w, b))
    return params


# ---------------------------------------------------------------------------
# Pure-JAX references for sanity checks.
# ---------------------------------------------------------------------------
def fnn_forward_ref(params, x, activation="tanh", use_bf16=False):
    act = _get_activation(activation)
    n = len(params)
    for j, (w, b) in enumerate(params):
        if use_bf16:
            y = jnp.dot(x.astype(jnp.bfloat16), w.astype(jnp.bfloat16),
                        preferred_element_type=jnp.float32) + b
        else:
            y = x @ w + b
        x = act(y) if j < n - 1 else y
    return x


if __name__ == "__main__":
    # Small deterministic example: FNN([16, 32, 32, 8], 'tanh', 'Glorot normal')
    layer_sizes = [16, 32, 32, 8]
    activation = "tanh"
    batch = 8

    key = jax.random.PRNGKey(0)
    key_p, key_x = jax.random.split(key)
    params = init_fnn_params(key_p, layer_sizes, "Glorot normal")
    x = jax.random.normal(key_x, (batch, layer_sizes[0]), dtype=jnp.float32)

    # bf16-MXU fused path (default)
    out_bf16 = jax.block_until_ready(fnn_forward(params, x, activation=activation))
    # exact f32 fused path
    out_f32 = jax.block_until_ready(
        fnn_forward(params, x, activation=activation, use_bf16=False)
    )

    ref_f32 = fnn_forward_ref(params, x, activation=activation, use_bf16=False)
    ref_bf16 = fnn_forward_ref(params, x, activation=activation, use_bf16=True)

    assert out_f32.shape == (batch, layer_sizes[-1])
    assert out_bf16.shape == (batch, layer_sizes[-1])
    # f32 kernel path must match plain JAX tightly.
    assert jnp.allclose(out_f32, ref_f32, atol=1e-5, rtol=1e-5), "f32 Pallas mismatch"
    # bf16 kernel path matches a bf16 JAX reference tightly...
    assert jnp.allclose(out_bf16, ref_bf16, atol=2e-3, rtol=2e-3), "bf16 Pallas mismatch"
    # ...and the full-precision reference within bf16 tolerance.
    assert jnp.allclose(out_bf16, ref_f32, atol=3e-2, rtol=3e-2), "bf16 vs f32 drift"

    print("KERNEL_OK")
</pallas_src>

<mosaic_0001>
module attributes {stable_mosaic.version = 11 : i64} {
  func.func @_fused_mlp_kernel(%arg0: i32, %arg1: memref<8x128xf32, #tpu.memory_space<vmem>>, %arg2: memref<128x128xf32, #tpu.memory_space<vmem>>, %arg3: memref<1x128xf32, #tpu.memory_space<vmem>>, %arg4: memref<128x128xf32, #tpu.memory_space<vmem>>, %arg5: memref<1x128xf32, #tpu.memory_space<vmem>>, %arg6: memref<128x128xf32, #tpu.memory_space<vmem>>, %arg7: memref<1x128xf32, #tpu.memory_space<vmem>>, %arg8: memref<8x128xf32, #tpu.memory_space<vmem>>) attributes {dimension_semantics = [#tpu.dimension_semantics<parallel>], iteration_bounds = array<i64: 1>, scalar_prefetch = 0 : i64, scratch_operands = 0 : i64, tpu.core_type = #tpu.core_type<tc>, window_params = [{transform_indices = @transform_0, window_bounds = array<i64: 8, 128>}, {pipeline_mode = #tpu.pipeline_mode<synchronous>, transform_indices = @transform_1, window_bounds = array<i64: 128, 128>}, {pipeline_mode = #tpu.pipeline_mode<synchronous>, transform_indices = @transform_2, window_bounds = array<i64: 1, 128>}, {pipeline_mode = #tpu.pipeline_mode<synchronous>, transform_indices = @transform_3, window_bounds = array<i64: 128, 128>}, {pipeline_mode = #tpu.pipeline_mode<synchronous>, transform_indices = @transform_4, window_bounds = array<i64: 1, 128>}, {pipeline_mode = #tpu.pipeline_mode<synchronous>, transform_indices = @transform_5, window_bounds = array<i64: 128, 128>}, {pipeline_mode = #tpu.pipeline_mode<synchronous>, transform_indices = @transform_6, window_bounds = array<i64: 1, 128>}, {transform_indices = @transform_7, window_bounds = array<i64: 8, 128>}]} {
    %c0 = arith.constant 0 : index
    %c0_0 = arith.constant 0 : index
    %0 = vector.load %arg1[%c0, %c0_0] : memref<8x128xf32, #tpu.memory_space<vmem>>, vector<8x128xf32>
    %c0_1 = arith.constant 0 : index
    %c0_2 = arith.constant 0 : index
    %1 = vector.load %arg2[%c0_1, %c0_2] : memref<128x128xf32, #tpu.memory_space<vmem>>, vector<128x128xf32>
    %c0_3 = arith.constant 0 : index
    %c0_4 = arith.constant 0 : index
    %2 = vector.load %arg3[%c0_3, %c0_4] : memref<1x128xf32, #tpu.memory_space<vmem>>, vector<1x128xf32>
    %3 = arith.truncf %0 : vector<8x128xf32> to vector<8x128xbf16>
    %4 = arith.truncf %1 : vector<128x128xf32> to vector<128x128xbf16>
    %cst = arith.constant dense<0.000000e+00> : vector<8x128xf32>
    %5 = tpu.matmul %3, %4, %cst {dimension_numbers = #tpu.dot_dimension_numbers<[1], [0], [0], [1], [0, 0, 1, 1], [], []>} : vector<8x128xbf16>, vector<128x128xbf16>, vector<8x128xf32> -> vector<8x128xf32>
    %6 = vector.broadcast %2 : vector<1x128xf32> to vector<8x128xf32>
    %7 = arith.addf %5, %6 : vector<8x128xf32>
    %8 = math.tanh %7 : vector<8x128xf32>
    %c0_5 = arith.constant 0 : index
    %c0_6 = arith.constant 0 : index
    %9 = vector.load %arg4[%c0_5, %c0_6] : memref<128x128xf32, #tpu.memory_space<vmem>>, vector<128x128xf32>
    %c0_7 = arith.constant 0 : index
    %c0_8 = arith.constant 0 : index
    %10 = vector.load %arg5[%c0_7, %c0_8] : memref<1x128xf32, #tpu.memory_space<vmem>>, vector<1x128xf32>
    %11 = arith.truncf %8 : vector<8x128xf32> to vector<8x128xbf16>
    %12 = arith.truncf %9 : vector<128x128xf32> to vector<128x128xbf16>
    %cst_9 = arith.constant dense<0.000000e+00> : vector<8x128xf32>
    %13 = tpu.matmul %11, %12, %cst_9 {dimension_numbers = #tpu.dot_dimension_numbers<[1], [0], [0], [1], [0, 0, 1, 1], [], []>} : vector<8x128xbf16>, vector<128x128xbf16>, vector<8x128xf32> -> vector<8x128xf32>
    %14 = vector.broadcast %10 : vector<1x128xf32> to vector<8x128xf32>
    %15 = arith.addf %13, %14 : vector<8x128xf32>
    %16 = math.tanh %15 : vector<8x128xf32>
    %c0_10 = arith.constant 0 : index
    %c0_11 = arith.constant 0 : index
    %17 = vector.load %arg6[%c0_10, %c0_11] : memref<128x128xf32, #tpu.memory_space<vmem>>, vector<128x128xf32>
    %c0_12 = arith.constant 0 : index
    %c0_13 = arith.constant 0 : index
    %18 = vector.load %arg7[%c0_12, %c0_13] : memref<1x128xf32, #tpu.memory_space<vmem>>, vector<1x128xf32>
    %19 = arith.truncf %16 : vector<8x128xf32> to vector<8x128xbf16>
    %20 = arith.truncf %17 : vector<128x128xf32> to vector<128x128xbf16>
    %cst_14 = arith.constant dense<0.000000e+00> : vector<8x128xf32>
    %21 = tpu.matmul %19, %20, %cst_14 {dimension_numbers = #tpu.dot_dimension_numbers<[1], [0], [0], [1], [0, 0, 1, 1], [], []>} : vector<8x128xbf16>, vector<128x128xbf16>, vector<8x128xf32> -> vector<8x128xf32>
    %22 = vector.broadcast %18 : vector<1x128xf32> to vector<8x128xf32>
    %23 = arith.addf %21, %22 : vector<8x128xf32>
    %c0_15 = arith.constant 0 : index
    %c0_16 = arith.constant 0 : index
    %24 = vector.load %arg8[%c0_15, %c0_16] : memref<8x128xf32, #tpu.memory_space<vmem>>, vector<8x128xf32>
    tpu.vector_store %arg8[%c0_15, %c0_16], %23 {strides = array<i32>} : memref<8x128xf32, #tpu.memory_space<vmem>>, vector<8x128xf32>,
    return
  }
  func.func @transform_0(%arg0: i32) -> (i32, i32) {
    %c0_i32 = arith.constant 0 : i32
    %c0_i32_0 = arith.constant 0 : i32
    return %arg0, %c0_i32 : i32, i32
  }
  func.func @transform_1(%arg0: i32) -> (i32, i32) {
    %c0_i32 = arith.constant 0 : i32
    %c0_i32_0 = arith.constant 0 : i32
    %c0_i32_1 = arith.constant 0 : i32
    return %c0_i32, %c0_i32_0 : i32, i32
  }
  func.func @transform_2(%arg0: i32) -> (i32, i32) {
    %c0_i32 = arith.constant 0 : i32
    %c0_i32_0 = arith.constant 0 : i32
    %c0_i32_1 = arith.constant 0 : i32
    return %c0_i32, %c0_i32_0 : i32, i32
  }
  func.func @transform_3(%arg0: i32) -> (i32, i32) {
    %c0_i32 = arith.constant 0 : i32
    %c0_i32_0 = arith.constant 0 : i32
    %c0_i32_1 = arith.constant 0 : i32
    return %c0_i32, %c0_i32_0 : i32, i32
  }
  func.func @transform_4(%arg0: i32) -> (i32, i32) {
    %c0_i32 = arith.constant 0 : i32
    %c0_i32_0 = arith.constant 0 : i32
    %c0_i32_1 = arith.constant 0 : i32
    return %c0_i32, %c0_i32_0 : i32, i32
  }
  func.func @transform_5(%arg0: i32) -> (i32, i32) {
    %c0_i32 = arith.constant 0 : i32
    %c0_i32_0 = arith.constant 0 : i32
    %c0_i32_1 = arith.constant 0 : i32
    return %c0_i32, %c0_i32_0 : i32, i32
  }
  func.func @transform_6(%arg0: i32) -> (i32, i32) {
    %c0_i32 = arith.constant 0 : i32
    %c0_i32_0 = arith.constant 0 : i32
    %c0_i32_1 = arith.constant 0 : i32
    return %c0_i32, %c0_i32_0 : i32, i32
  }
  func.func @transform_7(%arg0: i32) -> (i32, i32) {
    %c0_i32 = arith.constant 0 : i32
    %c0_i32_0 = arith.constant 0 : i32
    return %arg0, %c0_i32 : i32, i32
  }
}

</mosaic_0001>

<llo_original>
// kernel: tpu_custom_call.1
$region0: #{tpu_custom_call.1}
  #allocation0 [shape = 'u32[]', space=smem, size = 0x4, offset = 0x4, fixed_abs, tag = 'smem constant byte address 0x4 - core index']
  #allocation1 [shape = 'u32[72,128]{1,0:T(1,128)}', space=vmem, size = 0x9000, scoped, tag = 'internal scratch']
  %s0 = inlined_call_operand.hbm [shape: f32[8,128], index: 0, kind: input, shape index: {}]
  %s1 = inlined_call_operand.hbm [shape: f32[128,128], index: 1, kind: input, shape index: {}]
  %s2 = inlined_call_operand.vmem [shape: f32[1,128], index: 2, kind: input, shape index: {}]
  %s3 = inlined_call_operand.hbm [shape: f32[128,128], index: 3, kind: input, shape index: {}]
  %s4 = inlined_call_operand.vmem [shape: f32[1,128], index: 4, kind: input, shape index: {}]
  %s5 = inlined_call_operand.hbm [shape: f32[128,128], index: 5, kind: input, shape index: {}]
  %s6 = inlined_call_operand.vmem [shape: f32[1,128], index: 6, kind: input, shape index: {}]
  %s7 = inlined_call_operand.hbm [shape: f32[8,128], index: 7, kind: output, shape index: {}]
  %s8 = sld [smem:[#allocation0]]
  $region54: #{tpu_custom_call.1} parent=0
    _
  %s10 = ssub.s32 1, %s8
  %s11 = scalar_select 0, %s10, %s8
  $region1: #{tpu_custom_call.1} parent=0
    #allocation2 [shape = 'u8[4096]{0}', space=vmem, size = 0x1000, scoped, tag = 'input window, operand 0, single buffered']
    #allocation3 [shape = 's32[1]{0}', space=sflag, size = 0x4, scoped, tag = 'scoped memory for tpu_custom_call.1']
    #allocation4 [shape = 's32[1]{0}', space=sflag, size = 0x4, scoped, tag = 'scoped memory for tpu_custom_call.1']
    #allocation5 [shape = 'u8[65536]{0}', space=vmem, size = 0x10000, scoped, tag = 'input window, operand 1, single buffered']
    #allocation6 [shape = 's32[1]{0}', space=sflag, size = 0x4, scoped, tag = 'scoped memory for tpu_custom_call.1']
    #allocation7 [shape = 'u8[65536]{0}', space=vmem, size = 0x10000, scoped, tag = 'input window, operand 3, single buffered']
    #allocation8 [shape = 'u8[65536]{0}', space=vmem, size = 0x10000, scoped, tag = 'input window, operand 5, single buffered']
    #allocation9 [shape = 's32[1]{0}', space=sflag, size = 0x4, scoped, tag = 'scoped memory for tpu_custom_call.1']
    #allocation10 [shape = 'u8[4096]{0}', space=vmem, size = 0x1000, scoped, tag = 'output window, operand 0, single buffered']
    %12 = vsyncpa [#allocation3], 0
    %13 = vsyncpa [#allocation6], 0
    %14 = vsyncpa [#allocation9], 0
    %15 = vsyncpa [#allocation4], 0
    // Predicated region
    $region2: #{tpu_custom_call.1} parent=1 // pred_check
      _
    $region3: #{tpu_custom_call.1} parent=1 // pred_check_branch
      %17 = sbr.rel (0) target = $region5
    $region4: #{tpu_custom_call.1} parent=1 // pred_region
      %19 = vsyncadd [#allocation3], 0
      %s21 = sshll.u32 %s0, 4
      %s22 = int_to_ptr.hbm [resolvable:$true] %s21
      %s23 = sshll.u32 [#allocation2], 4
      %s24 = int_to_ptr.vmem [resolvable:$true] %s23
      %26 = dma.hbm_to_vmem [thread:$0]  %s22, 128, %s24, [#allocation3]
    $region5: #{tpu_custom_call.1} parent=1 // pred_fallthru
      _
    // Predicated region
    $region6: #{tpu_custom_call.1} parent=1 // pred_check
      _
    $region7: #{tpu_custom_call.1} parent=1 // pred_check_branch
      %28 = sbr.rel (0) target = $region9
    $region8: #{tpu_custom_call.1} parent=1 // pred_region
      %30 = vsyncadd [#allocation6], 0
      %s31 = sshll.u32 %s1, 4
      %s32 = int_to_ptr.hbm [resolvable:$true] %s31
      %s33 = sshll.u32 [#allocation5], 4
      %s34 = int_to_ptr.vmem [resolvable:$true] %s33
      %39 = dma.hbm_to_vmem [thread:$0]  %s32, 2048, %s34, [#allocation6], 128, 128, 8
    $region9: #{tpu_custom_call.1} parent=1 // pred_fallthru
      _
    // Predicated region
    $region10: #{tpu_custom_call.1} parent=1 // pred_check
      _
    $region11: #{tpu_custom_call.1} parent=1 // pred_check_branch
      %41 = sbr.rel (0) target = $region13
    $region12: #{tpu_custom_call.1} parent=1 // pred_region
      _
    $region13: #{tpu_custom_call.1} parent=1 // pred_fallthru
      _
    // Predicated region
    $region14: #{tpu_custom_call.1} parent=1 // pred_check
      _
    $region15: #{tpu_custom_call.1} parent=1 // pred_check_branch
      %43 = sbr.rel (0) target = $region17
    $region16: #{tpu_custom_call.1} parent=1 // pred_region
      %45 = vsyncadd [#allocation6], 0
      %s46 = sshll.u32 %s3, 4
      %s47 = int_to_ptr.hbm [resolvable:$true] %s46
      %s48 = sshll.u32 [#allocation7], 4
      %s49 = int_to_ptr.vmem [resolvable:$true] %s48
      %54 = dma.hbm_to_vmem [thread:$0]  %s47, 2048, %s49, [#allocation6], 128, 128, 8
    $region17: #{tpu_custom_call.1} parent=1 // pred_fallthru
      _
    // Predicated region
    $region18: #{tpu_custom_call.1} parent=1 // pred_check
      _
    $region19: #{tpu_custom_call.1} parent=1 // pred_check_branch
      %56 = sbr.rel (0) target = $region21
    $region20: #{tpu_custom_call.1} parent=1 // pred_region
      _
    $region21: #{tpu_custom_call.1} parent=1 // pred_fallthru
      _
    // Predicated region
    $region22: #{tpu_custom_call.1} parent=1 // pred_check
      _
    $region23: #{tpu_custom_call.1} parent=1 // pred_check_branch
      %58 = sbr.rel (0) target = $region25
    $region24: #{tpu_custom_call.1} parent=1 // pred_region
      %60 = vsyncadd [#allocation9], 0
      %s61 = sshll.u32 %s5, 4
      %s62 = int_to_ptr.hbm [resolvable:$true] %s61
      %s63 = sshll.u32 [#allocation8], 4
      %s64 = int_to_ptr.vmem [resolvable:$true] %s63
      %69 = dma.hbm_to_vmem [thread:$0]  %s62, 2048, %s64, [#allocation9], 128, 128, 8
    $region25: #{tpu_custom_call.1} parent=1 // pred_fallthru
      _
    // Predicated region
    $region26: #{tpu_custom_call.1} parent=1 // pred_check
      _
    $region27: #{tpu_custom_call.1} parent=1 // pred_check_branch
      %71 = sbr.rel (0) target = $region29
    $region28: #{tpu_custom_call.1} parent=1 // pred_region
      _
    $region29: #{tpu_custom_call.1} parent=1 // pred_fallthru
      _
    // Predicated region
    $region30: #{tpu_custom_call.1} parent=1 // pred_check
      _
    $region31: #{tpu_custom_call.1} parent=1 // pred_check_branch
      %73 = sbr.rel (0) target = $region33
    $region32: #{tpu_custom_call.1} parent=1 // pred_region
      %75 = dma.done [#allocation3], 128
    $region33: #{tpu_custom_call.1} parent=1 // pred_fallthru
      _
    // Predicated region
    $region34: #{tpu_custom_call.1} parent=1 // pred_check
      _
    $region35: #{tpu_custom_call.1} parent=1 // pred_check_branch
      %77 = sbr.rel (0) target = $region37
    $region36: #{tpu_custom_call.1} parent=1 // pred_region
      %79 = dma.done [#allocation6], 2048
    $region37: #{tpu_custom_call.1} parent=1 // pred_fallthru
      _
    // Predicated region
    $region38: #{tpu_custom_call.1} parent=1 // pred_check
      _
    $region39: #{tpu_custom_call.1} parent=1 // pred_check_branch
      %81 = sbr.rel (0) target = $region41
    $region40: #{tpu_custom_call.1} parent=1 // pred_region
      %83 = dma.done [#allocation6], 2048
    $region41: #{tpu_custom_call.1} parent=1 // pred_fallthru
      _
    // Predicated region
    $region42: #{tpu_custom_call.1} parent=1 // pred_check
      _
    $region43: #{tpu_custom_call.1} parent=1 // pred_check_branch
      %85 = sbr.rel (0) target = $region45
    $region44: #{tpu_custom_call.1} parent=1 // pred_region
      %87 = dma.done [#allocation9], 2048
    $region45: #{tpu_custom_call.1} parent=1 // pred_fallthru
      _
    %v88 = vld [vmem:[#allocation2] sm:$0xff]
    %v89 = vld [vmem:[#allocation5] sm:$0xff]
    %v90 = vld [vmem:[#allocation5 + $0x8] sm:$0xff]
    %v91 = vld [vmem:[#allocation5 + $0x10] sm:$0xff]
    %v92 = vld [vmem:[#allocation5 + $0x18] sm:$0xff]
    %v93 = vld [vmem:[#allocation5 + $0x20] sm:$0xff]
    %v94 = vld [vmem:[#allocation5 + $0x28] sm:$0xff]
    %v95 = vld [vmem:[#allocation5 + $0x30] sm:$0xff]
    %v96 = vld [vmem:[#allocation5 + $0x38] sm:$0xff]
    %v97 = vld [vmem:[#allocation5 + $0x40] sm:$0xff]
    %v98 = vld [vmem:[#allocation5 + $0x48] sm:$0xff]
    %v99 = vld [vmem:[#allocation5 + $0x50] sm:$0xff]
    %v100 = vld [vmem:[#allocation5 + $0x58] sm:$0xff]
    %v101 = vld [vmem:[#allocation5 + $0x60] sm:$0xff]
    %v102 = vld [vmem:[#allocation5 + $0x68] sm:$0xff]
    %v103 = vld [vmem:[#allocation5 + $0x70] sm:$0xff]
    %v104 = vld [vmem:[#allocation5 + $0x78] sm:$0xff]
    %v105 = vld [vmem:[%s2] sm:$0x1]
    %v106 = vpack.c.bf16 %v88, %v88
    %v107 = vpack.c.bf16 %v90, %v89
    %v108 = vpack.c.bf16 %v92, %v91
    %v109 = vpack.c.bf16 %v94, %v93
    %v110 = vpack.c.bf16 %v96, %v95
    %v111 = vpack.c.bf16 %v98, %v97
    %v112 = vpack.c.bf16 %v100, %v99
    %v113 = vpack.c.bf16 %v102, %v101
    %v114 = vpack.c.bf16 %v104, %v103
    %v116 = vperm.slane %v105, 0
    %118 = vmatpush.bf16.msra.mxu0 %v114
    %119 = vmatpush.bf16.msra.mxu0 %v113
    %120 = vmatpush.bf16.msra.mxu0 %v112
    %121 = vmatpush.bf16.msra.mxu0 %v111
    %122 = vmatpush.bf16.msra.mxu0 %v110
    %123 = vmatpush.bf16.msra.mxu0 %v109
    %124 = vmatpush.bf16.msra.mxu0 %v108
    %125 = vmatpush.bf16.msra.mxu0 %v107
    %126 = vmatmul.bf16.gmra.mxu0 %v106
    %v127 = vpop.f32.mrf.mxu0
    %v128 = vadd.f32 %v116, %v127
    %v129 = vpop.f32.mrf.mxu0
    %130 = vdwg.mxu0
    %v131 = vtanh.pop %v128
    %v132 = vld [vmem:[#allocation7] sm:$0xff]
    %v133 = vld [vmem:[#allocation7 + $0x8] sm:$0xff]
    %v134 = vld [vmem:[#allocation7 + $0x10] sm:$0xff]
    %v135 = vld [vmem:[#allocation7 + $0x18] sm:$0xff]
    %v136 = vld [vmem:[#allocation7 + $0x20] sm:$0xff]
    %v137 = vld [vmem:[#allocation7 + $0x28] sm:$0xff]
    %v138 = vld [vmem:[#allocation7 + $0x30] sm:$0xff]
    %v139 = vld [vmem:[#allocation7 + $0x38] sm:$0xff]
    %v140 = vld [vmem:[#allocation7 + $0x40] sm:$0xff]
    %v141 = vld [vmem:[#allocation7 + $0x48] sm:$0xff]
    %v142 = vld [vmem:[#allocation7 + $0x50] sm:$0xff]
    %v143 = vld [vmem:[#allocation7 + $0x58] sm:$0xff]
    %v144 = vld [vmem:[#allocation7 + $0x60] sm:$0xff]
    %v145 = vld [vmem:[#allocation7 + $0x68] sm:$0xff]
    %v146 = vld [vmem:[#allocation7 + $0x70] sm:$0xff]
    %v147 = vld [vmem:[#allocation7 + $0x78] sm:$0xff]
    %v148 = vld [vmem:[%s4] sm:$0x1]
    %v149 = vpack.c.bf16 %v131, %v131
    %v150 = vpack.c.bf16 %v133, %v132
    %v151 = vpack.c.bf16 %v135, %v134
    %v152 = vpack.c.bf16 %v137, %v136
    %v153 = vpack.c.bf16 %v139, %v138
    %v154 = vpack.c.bf16 %v141, %v140
    %v155 = vpack.c.bf16 %v143, %v142
    %v156 = vpack.c.bf16 %v145, %v144
    %v157 = vpack.c.bf16 %v147, %v146
    %v159 = vperm.slane %v148, 0
    %161 = vmatpush.bf16.msra.mxu0 %v157
    %162 = vmatpush.bf16.msra.mxu0 %v156
    %163 = vmatpush.bf16.msra.mxu0 %v155
    %164 = vmatpush.bf16.msra.mxu0 %v154
    %165 = vmatpush.bf16.msra.mxu0 %v153
    %166 = vmatpush.bf16.msra.mxu0 %v152
    %167 = vmatpush.bf16.msra.mxu0 %v151
    %168 = vmatpush.bf16.msra.mxu0 %v150
    %169 = vmatmul.bf16.gmra.mxu0 %v149
    %v170 = vpop.f32.mrf.mxu0
    %v171 = vadd.f32 %v159, %v170
    %v172 = vpop.f32.mrf.mxu0
    %173 = vdwg.mxu0
    %v174 = vtanh.pop %v171
    %v175 = vld [vmem:[#allocation8] sm:$0xff]
    %v176 = vld [vmem:[#allocation8 + $0x8] sm:$0xff]
    %v177 = vld [vmem:[#allocation8 + $0x10] sm:$0xff]
    %v178 = vld [vmem:[#allocation8 + $0x18] sm:$0xff]
    %v179 = vld [vmem:[#allocation8 + $0x20] sm:$0xff]
    %v180 = vld [vmem:[#allocation8 + $0x28] sm:$0xff]
    %v181 = vld [vmem:[#allocation8 + $0x30] sm:$0xff]
    %v182 = vld [vmem:[#allocation8 + $0x38] sm:$0xff]
    %v183 = vld [vmem:[#allocation8 + $0x40] sm:$0xff]
    %v184 = vld [vmem:[#allocation8 + $0x48] sm:$0xff]
    %v185 = vld [vmem:[#allocation8 + $0x50] sm:$0xff]
    %v186 = vld [vmem:[#allocation8 + $0x58] sm:$0xff]
    %v187 = vld [vmem:[#allocation8 + $0x60] sm:$0xff]
    %v188 = vld [vmem:[#allocation8 + $0x68] sm:$0xff]
    %v189 = vld [vmem:[#allocation8 + $0x70] sm:$0xff]
    %v190 = vld [vmem:[#allocation8 + $0x78] sm:$0xff]
    %v191 = vld [vmem:[%s6] sm:$0x1]
    %v192 = vpack.c.bf16 %v174, %v174
    %v193 = vpack.c.bf16 %v176, %v175
    %v194 = vpack.c.bf16 %v178, %v177
    %v195 = vpack.c.bf16 %v180, %v179
    %v196 = vpack.c.bf16 %v182, %v181
    %v197 = vpack.c.bf16 %v184, %v183
    %v198 = vpack.c.bf16 %v186, %v185
    %v199 = vpack.c.bf16 %v188, %v187
    %v200 = vpack.c.bf16 %v190, %v189
    %v202 = vperm.slane %v191, 0
    %204 = vmatpush.bf16.msra.mxu0 %v200
    %205 = vmatpush.bf16.msra.mxu0 %v199
    %206 = vmatpush.bf16.msra.mxu0 %v198
    %207 = vmatpush.bf16.msra.mxu0 %v197
    %208 = vmatpush.bf16.msra.mxu0 %v196
    %209 = vmatpush.bf16.msra.mxu0 %v195
    %210 = vmatpush.bf16.msra.mxu0 %v194
    %211 = vmatpush.bf16.msra.mxu0 %v193
    %212 = vmatmul.bf16.gmra.mxu0 %v192
    %v213 = vpop.f32.mrf.mxu0
    %v214 = vadd.f32 %v202, %v213
    %v215 = vpop.f32.mrf.mxu0
    %216 = vdwg.mxu0
    %217 = vst [vmem:[#allocation10] sm:$0xff] %v214
    // Predicated region
    $region46: #{tpu_custom_call.1} parent=1 // pred_check
      _
    $region47: #{tpu_custom_call.1} parent=1 // pred_check_branch
      %219 = sbr.rel (0) target = $region49
    $region48: #{tpu_custom_call.1} parent=1 // pred_region
      %221 = vsyncadd [#allocation4], 0
      %s223 = sshll.u32 [#allocation10], 4
      %s224 = int_to_ptr.vmem [resolvable:$true] %s223
      %s225 = sshll.u32 %s7, 4
      %s226 = int_to_ptr.hbm [resolvable:$true] %s225
      %228 = dma.vmem_to_hbm [thread:$0]  %s224, 128, %s226, [#allocation4]
    $region49: #{tpu_custom_call.1} parent=1 // pred_fallthru
      _
    // Predicated region
    $region50: #{tpu_custom_call.1} parent=1 // pred_check
      _
    $region51: #{tpu_custom_call.1} parent=1 // pred_check_branch
      %230 = sbr.rel (0) target = $region53
    $region52: #{tpu_custom_call.1} parent=1 // pred_region
      %232 = dma.done [#allocation4], 128
    $region53: #{tpu_custom_call.1} parent=1 // pred_fallthru
      _
    %233 = vsyncpa [#allocation3], 1
    %234 = vsyncpa [#allocation6], 1
    %235 = vsyncpa [#allocation9], 1
    %236 = vsyncpa [#allocation4], 1

</llo_original>
